<compile_context>
chip_gen: v5e
topology: v5e:2x2
jax: 0.10.0
libtpu: 0.0.40
codegen_flags: <defaults>
</compile_context>

<pallas_src>
import functools

import jax
import jax.numpy as jnp
from jax.experimental import pallas as pl
from jax.experimental.pallas import tpu as pltpu


def _mha_kernel(q_ref, k_ref, v_ref, wq_ref, wk_ref, wv_ref, wu_ref,
                gamma_ref, beta_ref, out_ref, *attn_refs,
                n_head, dim_k, dim_v, eps):
    f32 = jnp.float32
    bf16 = jnp.bfloat16
    H = n_head

    # One grid step = one batch element. All refs are VMEM tiles.
    q = q_ref[0]                      # (Lq, d_model) f32
    k = k_ref[0]                      # (Lk, d_model) f32
    v = v_ref[0]                      # (Lk, d_model) f32
    Lq, d_model = q.shape
    Lk = k.shape[0]

    wqh = wq_ref[...]                 # (H, dk, d_model) bf16  (pre-arranged in wrapper)
    wkh = wk_ref[...]                 # (H, dk, d_model) bf16
    wvh = wv_ref[...]                 # (H, dv, d_model) bf16
    wuh = wu_ref[...]                 # (H, d_model, dv) bf16

    # --- head-batched projections (MXU, bf16 operands, f32 accumulation) ---
    q_b = jnp.broadcast_to(q.astype(bf16)[None], (H, Lq, d_model))
    k_b = jnp.broadcast_to(k.astype(bf16)[None], (H, Lk, d_model))
    v_b = jnp.broadcast_to(v.astype(bf16)[None], (H, Lk, d_model))

    qh = jnp.einsum('hld,hkd->hlk', q_b, wqh,
                    preferred_element_type=f32)          # (H, Lq, dk)
    kh = jnp.einsum('hld,hkd->hlk', k_b, wkh,
                    preferred_element_type=f32)          # (H, Lk, dk)
    vh = jnp.einsum('hld,hkd->hlk', v_b, wvh,
                    preferred_element_type=f32)          # (H, Lk, dv)

    inv_scale = 1.0 / (dim_k ** 0.5)
    qh = qh * inv_scale

    # --- single batched-over-heads energy matmul + stable softmax (f32) ---
    energy = jnp.einsum('hqd,hkd->hqk', qh.astype(bf16), kh.astype(bf16),
                        preferred_element_type=f32)      # (H, Lq, Lk)
    # TODO(synk): optional attention mask (mask == 0 -> -1e9) not wired in;
    # the module is exercised with mask=None.
    m = jnp.max(energy, axis=-1, keepdims=True)
    e = jnp.exp(energy - m)
    attn = e * pl.reciprocal(jnp.sum(e, axis=-1, keepdims=True), approx=True)

    if attn_refs:                                        # optional O(L^2) writeback
        attn_refs[0][0] = attn

    # --- weighted sum of values (batched over heads) ---
    ctx = jnp.einsum('hqk,hkd->hqd', attn.astype(bf16), vh.astype(bf16),
                     preferred_element_type=f32)         # (H, Lq, dv)

    # --- unify heads: per-head (Lq,dv)x(dv,d_model), summed over heads ---
    out_h = jnp.einsum('hqd,hmd->hqm', ctx.astype(bf16), wuh,
                       preferred_element_type=f32)       # (H, Lq, d_model)
    out = jnp.sum(out_h, axis=0)                         # (Lq, d_model)

    # TODO(synk): nn.Dropout is identity in eval mode; no dropout applied here.
    out = out + q                                        # residual (original f32 q)

    # --- LayerNorm (f32) ---
    mean = jnp.mean(out, axis=-1, keepdims=True)
    var = jnp.mean((out - mean) ** 2, axis=-1, keepdims=True)
    normed = (out - mean) * jax.lax.rsqrt(var + eps)
    out_ref[0] = normed * gamma_ref[...] + beta_ref[...]


def multi_head_attention(q, k, v, params, *, n_head, dim_k, dim_v, eps=1e-6,
                         return_attention=True):
    """q, k, v: (batch, len, d_model) float32. Returns (out, attention)."""
    B, Lq, d_model = q.shape
    Lk = k.shape[1]
    wq, wk, wv, wu, gamma, beta = params

    # Pre-arrange + cast weights in the wrapper so the kernel never transposes:
    #   wq/wk: (H*dk, d_model) -> (H, dk, d_model)
    #   wv:    (H*dv, d_model) -> (H, dv, d_model)
    #   wu:    (d_model, H*dv) -> (H, d_model, dv)
    bf16 = jnp.bfloat16
    wqh = wq.reshape(n_head, dim_k, d_model).astype(bf16)
    wkh = wk.reshape(n_head, dim_k, d_model).astype(bf16)
    wvh = wv.reshape(n_head, dim_v, d_model).astype(bf16)
    wuh = jnp.transpose(wu.reshape(d_model, n_head, dim_v), (1, 0, 2)).astype(bf16)
    gamma2 = gamma.reshape(1, d_model).astype(jnp.float32)
    beta2 = beta.reshape(1, d_model).astype(jnp.float32)

    kernel = functools.partial(
        _mha_kernel, n_head=n_head, dim_k=dim_k, dim_v=dim_v, eps=eps)

    out_struct = jax.ShapeDtypeStruct((B, Lq, d_model), jnp.float32)
    attn_struct = jax.ShapeDtypeStruct((B, n_head, Lq, Lk), jnp.float32)
    out_spec = pl.BlockSpec((1, Lq, d_model), lambda b: (b, 0, 0))
    attn_spec = pl.BlockSpec((1, n_head, Lq, Lk), lambda b: (b, 0, 0, 0))

    if return_attention:
        out_shape = (out_struct, attn_struct)
        out_specs = [out_spec, attn_spec]
    else:
        out_shape = out_struct
        out_specs = out_spec

    grid_spec = pltpu.PrefetchScalarGridSpec(
        num_scalar_prefetch=0,
        grid=(B,),
        in_specs=[
            pl.BlockSpec((1, Lq, d_model), lambda b: (b, 0, 0)),
            pl.BlockSpec((1, Lk, d_model), lambda b: (b, 0, 0)),
            pl.BlockSpec((1, Lk, d_model), lambda b: (b, 0, 0)),
            pl.BlockSpec(wqh.shape, lambda b: (0, 0, 0)),
            pl.BlockSpec(wkh.shape, lambda b: (0, 0, 0)),
            pl.BlockSpec(wvh.shape, lambda b: (0, 0, 0)),
            pl.BlockSpec(wuh.shape, lambda b: (0, 0, 0)),
            pl.BlockSpec(gamma2.shape, lambda b: (0, 0)),
            pl.BlockSpec(beta2.shape, lambda b: (0, 0)),
        ],
        out_specs=out_specs,
    )

    result = pl.pallas_call(
        kernel,
        out_shape=out_shape,
        grid_spec=grid_spec,
        compiler_params=pltpu.CompilerParams(
            dimension_semantics=("parallel",)),   # shards batch across TCs (v7x)
    )(q, k, v, wqh, wkh, wvh, wuh, gamma2, beta2)

    if return_attention:
        return result
    return result, None


def _reference(q, k, v, params, *, n_head, dim_k, dim_v, eps=1e-6):
    wq, wk, wv, wu, gamma, beta = params
    B, Lq, dm = q.shape
    Lk = k.shape[1]
    qp = (q @ wq.T).reshape(B, Lq, n_head, dim_k).transpose(0, 2, 1, 3)
    kp = (k @ wk.T).reshape(B, Lk, n_head, dim_k).transpose(0, 2, 1, 3)
    vp = (v @ wv.T).reshape(B, Lk, n_head, dim_v).transpose(0, 2, 1, 3)
    energy = jnp.einsum('bhqd,bhkd->bhqk', qp / (dim_k ** 0.5), kp)
    attn = jax.nn.softmax(energy, axis=-1)
    ctx = jnp.einsum('bhqk,bhkd->bhqd', attn, vp)
    ctx = ctx.transpose(0, 2, 1, 3).reshape(B, Lq, n_head * dim_v)
    out = ctx @ wu.T + q
    mean = out.mean(-1, keepdims=True)
    var = ((out - mean) ** 2).mean(-1, keepdims=True)
    out = (out - mean) / jnp.sqrt(var + eps) * gamma[0] + beta[0]
    return out, attn


if __name__ == "__main__":
    # Small, d_model-divisible-by-n_head config consistent with the module.
    batch, seq, d_model = 2, 8, 32
    n_head, dim_k, dim_v = 4, 8, 8

    key = jax.random.PRNGKey(0)
    ks = jax.random.split(key, 8)

    def linear_init(k, out_f, in_f):
        bound = 1.0 / (in_f ** 0.5)
        return jax.random.uniform(k, (out_f, in_f), jnp.float32, -bound, bound)

    wq = linear_init(ks[0], dim_k * n_head, d_model)
    wk = linear_init(ks[1], dim_k * n_head, d_model)
    wv = linear_init(ks[2], dim_v * n_head, d_model)
    wu = linear_init(ks[3], d_model, dim_v * n_head)
    gamma = jnp.ones((1, d_model), jnp.float32)   # LayerNorm weight
    beta = jnp.zeros((1, d_model), jnp.float32)   # LayerNorm bias
    params = (wq, wk, wv, wu, gamma, beta)

    q = jax.random.normal(ks[4], (batch, seq, d_model), jnp.float32)
    k = jax.random.normal(ks[5], (batch, seq, d_model), jnp.float32)
    v = jax.random.normal(ks[6], (batch, seq, d_model), jnp.float32)

    out, attn = multi_head_attention(
        q, k, v, params, n_head=n_head, dim_k=dim_k, dim_v=dim_v)
    jax.block_until_ready((out, attn))

    ref_out, ref_attn = _reference(
        q, k, v, params, n_head=n_head, dim_k=dim_k, dim_v=dim_v)
    # bf16 MXU operands -> compare at mixed-precision tolerance.
    assert jnp.allclose(out, ref_out, atol=3e-2, rtol=3e-2), \
        float(jnp.max(jnp.abs(out - ref_out)))
    assert jnp.allclose(attn, ref_attn, atol=2e-2, rtol=2e-2), \
        float(jnp.max(jnp.abs(attn - ref_attn)))

    # Cheaper path without the O(L^2) attention-matrix writeback.
    out2, attn2 = multi_head_attention(
        q, k, v, params, n_head=n_head, dim_k=dim_k, dim_v=dim_v,
        return_attention=False)
    jax.block_until_ready(out2)
    assert attn2 is None
    assert jnp.allclose(out2, out, atol=1e-6)

    print("KERNEL_OK")
</pallas_src>

<mosaic_0001>
module attributes {stable_mosaic.version = 11 : i64} {
  func.func @_mha_kernel(%arg0: i32, %arg1: memref<1x8x32xf32, #tpu.memory_space<vmem>>, %arg2: memref<1x8x32xf32, #tpu.memory_space<vmem>>, %arg3: memref<1x8x32xf32, #tpu.memory_space<vmem>>, %arg4: memref<4x8x32xbf16, #tpu.memory_space<vmem>>, %arg5: memref<4x8x32xbf16, #tpu.memory_space<vmem>>, %arg6: memref<4x8x32xbf16, #tpu.memory_space<vmem>>, %arg7: memref<4x32x8xbf16, #tpu.memory_space<vmem>>, %arg8: memref<1x32xf32, #tpu.memory_space<vmem>>, %arg9: memref<1x32xf32, #tpu.memory_space<vmem>>, %arg10: memref<1x8x32xf32, #tpu.memory_space<vmem>>, %arg11: memref<1x4x8x8xf32, #tpu.memory_space<vmem>>) attributes {dimension_semantics = [#tpu.dimension_semantics<parallel>], iteration_bounds = array<i64: 2>, scalar_prefetch = 0 : i64, scratch_operands = 0 : i64, tpu.core_type = #tpu.core_type<tc>, window_params = [{transform_indices = @transform_0, window_bounds = array<i64: 1, 8, 32>}, {transform_indices = @transform_1, window_bounds = array<i64: 1, 8, 32>}, {transform_indices = @transform_2, window_bounds = array<i64: 1, 8, 32>}, {pipeline_mode = #tpu.pipeline_mode<synchronous>, transform_indices = @transform_3, window_bounds = array<i64: 4, 8, 32>}, {pipeline_mode = #tpu.pipeline_mode<synchronous>, transform_indices = @transform_4, window_bounds = array<i64: 4, 8, 32>}, {pipeline_mode = #tpu.pipeline_mode<synchronous>, transform_indices = @transform_5, window_bounds = array<i64: 4, 8, 32>}, {pipeline_mode = #tpu.pipeline_mode<synchronous>, transform_indices = @transform_6, window_bounds = array<i64: 4, 32, 8>}, {pipeline_mode = #tpu.pipeline_mode<synchronous>, transform_indices = @transform_7, window_bounds = array<i64: 1, 32>}, {pipeline_mode = #tpu.pipeline_mode<synchronous>, transform_indices = @transform_8, window_bounds = array<i64: 1, 32>}, {transform_indices = @transform_9, window_bounds = array<i64: 1, 8, 32>}, {transform_indices = @transform_10, window_bounds = array<i64: 1, 4, 8, 8>}]} {
    %c0 = arith.constant 0 : index
    %c0_0 = arith.constant 0 : index
    %c0_1 = arith.constant 0 : index
    %0 = vector.load %arg1[%c0, %c0_0, %c0_1] : memref<1x8x32xf32, #tpu.memory_space<vmem>>, vector<1x8x32xf32>
    %1 = vector.shape_cast %0 : vector<1x8x32xf32> to vector<8x32xf32>
    %c0_2 = arith.constant 0 : index
    %c0_3 = arith.constant 0 : index
    %c0_4 = arith.constant 0 : index
    %2 = vector.load %arg2[%c0_2, %c0_3, %c0_4] : memref<1x8x32xf32, #tpu.memory_space<vmem>>, vector<1x8x32xf32>
    %3 = vector.shape_cast %2 : vector<1x8x32xf32> to vector<8x32xf32>
    %c0_5 = arith.constant 0 : index
    %c0_6 = arith.constant 0 : index
    %c0_7 = arith.constant 0 : index
    %4 = vector.load %arg3[%c0_5, %c0_6, %c0_7] : memref<1x8x32xf32, #tpu.memory_space<vmem>>, vector<1x8x32xf32>
    %5 = vector.shape_cast %4 : vector<1x8x32xf32> to vector<8x32xf32>
    %c0_8 = arith.constant 0 : index
    %c0_9 = arith.constant 0 : index
    %c0_10 = arith.constant 0 : index
    %6 = vector.load %arg4[%c0_8, %c0_9, %c0_10] : memref<4x8x32xbf16, #tpu.memory_space<vmem>>, vector<4x8x32xbf16>
    %c0_11 = arith.constant 0 : index
    %c0_12 = arith.constant 0 : index
    %c0_13 = arith.constant 0 : index
    %7 = vector.load %arg5[%c0_11, %c0_12, %c0_13] : memref<4x8x32xbf16, #tpu.memory_space<vmem>>, vector<4x8x32xbf16>
    %c0_14 = arith.constant 0 : index
    %c0_15 = arith.constant 0 : index
    %c0_16 = arith.constant 0 : index
    %8 = vector.load %arg6[%c0_14, %c0_15, %c0_16] : memref<4x8x32xbf16, #tpu.memory_space<vmem>>, vector<4x8x32xbf16>
    %c0_17 = arith.constant 0 : index
    %c0_18 = arith.constant 0 : index
    %c0_19 = arith.constant 0 : index
    %9 = vector.load %arg7[%c0_17, %c0_18, %c0_19] : memref<4x32x8xbf16, #tpu.memory_space<vmem>>, vector<4x32x8xbf16>
    %10 = arith.truncf %1 : vector<8x32xf32> to vector<8x32xbf16>
    %11 = vector.shape_cast %10 : vector<8x32xbf16> to vector<1x8x32xbf16>
    %12 = vector.shape_cast %11 : vector<1x8x32xbf16> to vector<1x8x32xbf16>
    %13 = vector.broadcast %12 : vector<1x8x32xbf16> to vector<4x8x32xbf16>
    %14 = arith.truncf %3 : vector<8x32xf32> to vector<8x32xbf16>
    %15 = vector.shape_cast %14 : vector<8x32xbf16> to vector<1x8x32xbf16>
    %16 = vector.shape_cast %15 : vector<1x8x32xbf16> to vector<1x8x32xbf16>
    %17 = vector.broadcast %16 : vector<1x8x32xbf16> to vector<4x8x32xbf16>
    %18 = arith.truncf %5 : vector<8x32xf32> to vector<8x32xbf16>
    %19 = vector.shape_cast %18 : vector<8x32xbf16> to vector<1x8x32xbf16>
    %20 = vector.shape_cast %19 : vector<1x8x32xbf16> to vector<1x8x32xbf16>
    %21 = vector.broadcast %20 : vector<1x8x32xbf16> to vector<4x8x32xbf16>
    "tpu.trace_start"() <{level = 10 : i32, message = "hld,hkd->hlk"}> : () -> ()
    %cst = arith.constant dense<0.000000e+00> : vector<4x8x8xf32>
    %22 = tpu.matmul %13, %6, %cst {dimension_numbers = #tpu.dot_dimension_numbers<[2], [2], [1], [1], [0, 0, 0, 1, 1, 1], [0], [0]>} : vector<4x8x32xbf16>, vector<4x8x32xbf16>, vector<4x8x8xf32> -> vector<4x8x8xf32>
    %cst_20 = arith.constant dense<0.000000e+00> : vector<4x8x8xf32>
    %23 = tpu.matmul %17, %7, %cst_20 {dimension_numbers = #tpu.dot_dimension_numbers<[2], [2], [1], [1], [0, 0, 0, 1, 1, 1], [0], [0]>} : vector<4x8x32xbf16>, vector<4x8x32xbf16>, vector<4x8x8xf32> -> vector<4x8x8xf32>
    %cst_21 = arith.constant dense<0.000000e+00> : vector<4x8x8xf32>
    %24 = tpu.matmul %21, %8, %cst_21 {dimension_numbers = #tpu.dot_dimension_numbers<[2], [2], [1], [1], [0, 0, 0, 1, 1, 1], [0], [0]>} : vector<4x8x32xbf16>, vector<4x8x32xbf16>, vector<4x8x8xf32> -> vector<4x8x8xf32>
    "tpu.trace_stop"() : () -> ()
    %cst_22 = arith.constant 0.353553385 : f32
    %25 = vector.broadcast %cst_22 : f32 to vector<4x8x8xf32>
    %26 = arith.mulf %22, %25 : vector<4x8x8xf32>
    %27 = arith.truncf %26 : vector<4x8x8xf32> to vector<4x8x8xbf16>
    %28 = arith.truncf %23 : vector<4x8x8xf32> to vector<4x8x8xbf16>
    "tpu.trace_start"() <{level = 10 : i32, message = "hqd,hkd->hqk"}> : () -> ()
    %cst_23 = arith.constant dense<0.000000e+00> : vector<4x8x8xf32>
    %29 = tpu.matmul %27, %28, %cst_23 {dimension_numbers = #tpu.dot_dimension_numbers<[2], [2], [1], [1], [0, 0, 0, 1, 1, 1], [0], [0]>} : vector<4x8x8xbf16>, vector<4x8x8xbf16>, vector<4x8x8xf32> -> vector<4x8x8xf32>
    "tpu.trace_stop"() : () -> ()
    %cst_24 = arith.constant dense<0xFF800000> : vector<4x8xf32>
    %30 = vector.multi_reduction <maximumf>, %29, %cst_24 [2] : vector<4x8x8xf32> to vector<4x8xf32>
    %31 = vector.shape_cast %30 : vector<4x8xf32> to vector<4x8x1xf32>
    %32 = vector.broadcast %31 : vector<4x8x1xf32> to vector<4x8x8xf32>
    %33 = arith.subf %29, %32 : vector<4x8x8xf32>
    %34 = math.exp %33 : vector<4x8x8xf32>
    %cst_25 = arith.constant dense<0.000000e+00> : vector<4x8xf32>
    %35 = vector.multi_reduction <add>, %34, %cst_25 [2] : vector<4x8x8xf32> to vector<4x8xf32>
    %36 = vector.shape_cast %35 : vector<4x8xf32> to vector<4x8x1xf32>
    %37 = tpu.reciprocal %36 {approx = true} : vector<4x8x1xf32> -> vector<4x8x1xf32>
    %38 = vector.broadcast %37 : vector<4x8x1xf32> to vector<4x8x8xf32>
    %39 = arith.mulf %34, %38 : vector<4x8x8xf32>
    %c0_26 = arith.constant 0 : index
    %c0_27 = arith.constant 0 : index
    %c0_28 = arith.constant 0 : index
    %c0_29 = arith.constant 0 : index
    %40 = vector.load %arg11[%c0_26, %c0_27, %c0_28, %c0_29] : memref<1x4x8x8xf32, #tpu.memory_space<vmem>>, vector<1x4x8x8xf32>
    %41 = vector.shape_cast %40 : vector<1x4x8x8xf32> to vector<4x8x8xf32>
    %42 = vector.shape_cast %39 : vector<4x8x8xf32> to vector<1x4x8x8xf32>
    tpu.vector_store %arg11[%c0_26, %c0_27, %c0_28, %c0_29], %42 {strides = array<i32>} : memref<1x4x8x8xf32, #tpu.memory_space<vmem>>, vector<1x4x8x8xf32>,
    %43 = arith.truncf %39 : vector<4x8x8xf32> to vector<4x8x8xbf16>
    %44 = arith.truncf %24 : vector<4x8x8xf32> to vector<4x8x8xbf16>
    "tpu.trace_start"() <{level = 10 : i32, message = "hqk,hkd->hqd"}> : () -> ()
    %cst_30 = arith.constant dense<0.000000e+00> : vector<4x8x8xf32>
    %45 = tpu.matmul %43, %44, %cst_30 {dimension_numbers = #tpu.dot_dimension_numbers<[2], [1], [1], [2], [0, 0, 0, 1, 1, 2], [0], [0]>} : vector<4x8x8xbf16>, vector<4x8x8xbf16>, vector<4x8x8xf32> -> vector<4x8x8xf32>
    "tpu.trace_stop"() : () -> ()
    %46 = arith.truncf %45 : vector<4x8x8xf32> to vector<4x8x8xbf16>
    "tpu.trace_start"() <{level = 10 : i32, message = "hqd,hmd->hqm"}> : () -> ()
    %cst_31 = arith.constant dense<0.000000e+00> : vector<4x8x32xf32>
    %47 = tpu.matmul %46, %9, %cst_31 {dimension_numbers = #tpu.dot_dimension_numbers<[2], [2], [1], [1], [0, 0, 0, 1, 1, 1], [0], [0]>} : vector<4x8x8xbf16>, vector<4x32x8xbf16>, vector<4x8x32xf32> -> vector<4x8x32xf32>
    "tpu.trace_stop"() : () -> ()
    %cst_32 = arith.constant dense<0.000000e+00> : vector<8x32xf32>
    %48 = vector.multi_reduction <add>, %47, %cst_32 [0] : vector<4x8x32xf32> to vector<8x32xf32>
    %49 = arith.addf %48, %1 : vector<8x32xf32>
    %cst_33 = arith.constant dense<0.000000e+00> : vector<8xf32>
    %50 = vector.multi_reduction <add>, %49, %cst_33 [1] : vector<8x32xf32> to vector<8xf32>
    %51 = vector.shape_cast %50 : vector<8xf32> to vector<8x1xf32>
    %cst_34 = arith.constant 3.200000e+01 : f32
    %52 = vector.broadcast %cst_34 : f32 to vector<8x1xf32>
    %53 = arith.divf %51, %52 : vector<8x1xf32>
    %54 = vector.broadcast %53 : vector<8x1xf32> to vector<8x32xf32>
    %55 = arith.subf %49, %54 : vector<8x32xf32>
    %56 = arith.mulf %55, %55 : vector<8x32xf32>
    %cst_35 = arith.constant dense<0.000000e+00> : vector<8xf32>
    %57 = vector.multi_reduction <add>, %56, %cst_35 [1] : vector<8x32xf32> to vector<8xf32>
    %58 = vector.shape_cast %57 : vector<8xf32> to vector<8x1xf32>
    %cst_36 = arith.constant 3.200000e+01 : f32
    %59 = vector.broadcast %cst_36 : f32 to vector<8x1xf32>
    %60 = arith.divf %58, %59 : vector<8x1xf32>
    %61 = vector.broadcast %53 : vector<8x1xf32> to vector<8x32xf32>
    %62 = arith.subf %49, %61 : vector<8x32xf32>
    %cst_37 = arith.constant 9.99999997E-7 : f32
    %63 = vector.broadcast %cst_37 : f32 to vector<8x1xf32>
    %64 = arith.addf %60, %63 : vector<8x1xf32>
    %65 = math.rsqrt %64 : vector<8x1xf32>
    %66 = vector.broadcast %65 : vector<8x1xf32> to vector<8x32xf32>
    %67 = arith.mulf %62, %66 : vector<8x32xf32>
    %c0_38 = arith.constant 0 : index
    %c0_39 = arith.constant 0 : index
    %68 = vector.load %arg8[%c0_38, %c0_39] : memref<1x32xf32, #tpu.memory_space<vmem>>, vector<1x32xf32>
    %69 = vector.broadcast %68 : vector<1x32xf32> to vector<8x32xf32>
    %70 = arith.mulf %67, %69 : vector<8x32xf32>
    %c0_40 = arith.constant 0 : index
    %c0_41 = arith.constant 0 : index
    %71 = vector.load %arg9[%c0_40, %c0_41] : memref<1x32xf32, #tpu.memory_space<vmem>>, vector<1x32xf32>
    %72 = vector.broadcast %71 : vector<1x32xf32> to vector<8x32xf32>
    %73 = arith.addf %70, %72 : vector<8x32xf32>
    %c0_42 = arith.constant 0 : index
    %c0_43 = arith.constant 0 : index
    %c0_44 = arith.constant 0 : index
    %74 = vector.load %arg10[%c0_42, %c0_43, %c0_44] : memref<1x8x32xf32, #tpu.memory_space<vmem>>, vector<1x8x32xf32>
    %75 = vector.shape_cast %74 : vector<1x8x32xf32> to vector<8x32xf32>
    %76 = vector.shape_cast %73 : vector<8x32xf32> to vector<1x8x32xf32>
    tpu.vector_store %arg10[%c0_42, %c0_43, %c0_44], %76 {strides = array<i32>} : memref<1x8x32xf32, #tpu.memory_space<vmem>>, vector<1x8x32xf32>,
    return
  }
  func.func @transform_0(%arg0: i32) -> (i32, i32, i32) {
    %c0_i32 = arith.constant 0 : i32
    %c0_i32_0 = arith.constant 0 : i32
    %c0_i32_1 = arith.constant 0 : i32
    return %arg0, %c0_i32, %c0_i32_0 : i32, i32, i32
  }
  func.func @transform_1(%arg0: i32) -> (i32, i32, i32) {
    %c0_i32 = arith.constant 0 : i32
    %c0_i32_0 = arith.constant 0 : i32
    %c0_i32_1 = arith.constant 0 : i32
    return %arg0, %c0_i32, %c0_i32_0 : i32, i32, i32
  }
  func.func @transform_2(%arg0: i32) -> (i32, i32, i32) {
    %c0_i32 = arith.constant 0 : i32
    %c0_i32_0 = arith.constant 0 : i32
    %c0_i32_1 = arith.constant 0 : i32
    return %arg0, %c0_i32, %c0_i32_0 : i32, i32, i32
  }
  func.func @transform_3(%arg0: i32) -> (i32, i32, i32) {
    %c0_i32 = arith.constant 0 : i32
    %c0_i32_0 = arith.constant 0 : i32
    %c0_i32_1 = arith.constant 0 : i32
    %c0_i32_2 = arith.constant 0 : i32
    return %c0_i32, %c0_i32_0, %c0_i32_1 : i32, i32, i32
  }
  func.func @transform_4(%arg0: i32) -> (i32, i32, i32) {
    %c0_i32 = arith.constant 0 : i32
    %c0_i32_0 = arith.constant 0 : i32
    %c0_i32_1 = arith.constant 0 : i32
    %c0_i32_2 = arith.constant 0 : i32
    return %c0_i32, %c0_i32_0, %c0_i32_1 : i32, i32, i32
  }
  func.func @transform_5(%arg0: i32) -> (i32, i32, i32) {
    %c0_i32 = arith.constant 0 : i32
    %c0_i32_0 = arith.constant 0 : i32
    %c0_i32_1 = arith.constant 0 : i32
    %c0_i32_2 = arith.constant 0 : i32
    return %c0_i32, %c0_i32_0, %c0_i32_1 : i32, i32, i32
  }
  func.func @transform_6(%arg0: i32) -> (i32, i32, i32) {
    %c0_i32 = arith.constant 0 : i32
    %c0_i32_0 = arith.constant 0 : i32
    %c0_i32_1 = arith.constant 0 : i32
    %c0_i32_2 = arith.constant 0 : i32
    return %c0_i32, %c0_i32_0, %c0_i32_1 : i32, i32, i32
  }
  func.func @transform_7(%arg0: i32) -> (i32, i32) {
    %c0_i32 = arith.constant 0 : i32
    %c0_i32_0 = arith.constant 0 : i32
    %c0_i32_1 = arith.constant 0 : i32
    return %c0_i32, %c0_i32_0 : i32, i32
  }
  func.func @transform_8(%arg0: i32) -> (i32, i32) {
    %c0_i32 = arith.constant 0 : i32
    %c0_i32_0 = arith.constant 0 : i32
    %c0_i32_1 = arith.constant 0 : i32
    return %c0_i32, %c0_i32_0 : i32, i32
  }
  func.func @transform_9(%arg0: i32) -> (i32, i32, i32) {
    %c0_i32 = arith.constant 0 : i32
    %c0_i32_0 = arith.constant 0 : i32
    %c0_i32_1 = arith.constant 0 : i32
    return %arg0, %c0_i32, %c0_i32_0 : i32, i32, i32
  }
  func.func @transform_10(%arg0: i32) -> (i32, i32, i32, i32) {
    %c0_i32 = arith.constant 0 : i32
    %c0_i32_0 = arith.constant 0 : i32
    %c0_i32_1 = arith.constant 0 : i32
    %c0_i32_2 = arith.constant 0 : i32
    return %arg0, %c0_i32, %c0_i32_0, %c0_i32_1 : i32, i32, i32, i32
  }
}

</mosaic_0001>

<llo_original>
// kernel: tpu_custom_call.1
$region0: #{tpu_custom_call.1}
  #allocation0 [shape = 'u32[]', space=smem, size = 0x4, offset = 0x4, fixed_abs, tag = 'smem constant byte address 0x4 - core index']
  #allocation1 [shape = 'u32[72,128]{1,0:T(1,128)}', space=vmem, size = 0x9000, scoped, tag = 'internal scratch']
  %s0 = inlined_call_operand.vmem [shape: f32[2,8,32], index: 0, kind: input, shape index: {}]
  %s1 = inlined_call_operand.vmem [shape: f32[2,8,32], index: 1, kind: input, shape index: {}]
  %s2 = inlined_call_operand.vmem [shape: f32[2,8,32], index: 2, kind: input, shape index: {}]
  %s3 = inlined_call_operand.vmem [shape: bf16[4,8,32], index: 3, kind: input, shape index: {}]
  %s4 = inlined_call_operand.vmem [shape: bf16[4,8,32], index: 4, kind: input, shape index: {}]
  %s5 = inlined_call_operand.hbm [shape: bf16[4,8,32], index: 5, kind: input, shape index: {}]
  %s6 = inlined_call_operand.vmem [shape: bf16[4,32,8], index: 6, kind: input, shape index: {}]
  %s7 = inlined_call_operand.vmem [shape: f32[1,32], index: 7, kind: input, shape index: {}]
  %s8 = inlined_call_operand.vmem [shape: f32[1,32], index: 8, kind: input, shape index: {}]
  %s9 = inlined_call_operand.hbm [shape: f32[2,8,32], index: 9, kind: output, shape index: {0}]
  %s10 = inlined_call_operand.hbm [shape: f32[2,4,8,8], index: 10, kind: output, shape index: {1}]
  %11 = xla_tuple %s9, %s10
  %s12 = sld [smem:[#allocation0]]
  $region81: #{tpu_custom_call.1} parent=0
    _
  %s14 = ssub.s32 1, %s12
  %s15 = scalar_select 0, %s14, %s12
  $region1: #{tpu_custom_call.1} parent=0
    #allocation2 [shape = 'u8[8192]{0}', space=vmem, size = 0x2000, scoped, tag = 'input window, operand 5, single buffered']
    #allocation3 [shape = 's32[2]{0}', space=sflag, size = 0x8, scoped, tag = 'scoped memory for tpu_custom_call.1']
    #allocation4 [shape = 's32[2]{0}', space=sflag, size = 0x8, scoped, tag = 'scoped memory for tpu_custom_call.1']
    #allocation5 [shape = 'u8[8192]{0}', space=vmem, size = 0x2000, scoped, tag = 'output window, operand 0']
    #allocation6 [shape = 'u8[32768]{0}', space=vmem, size = 0x8000, scoped, tag = 'output window, operand 1']
    #allocation7 [shape = 's32[2]{0}', space=sflag, size = 0x8, scoped, tag = 'scoped memory for tpu_custom_call.1']
    %16 = vsyncpa [#allocation3], 0
    %17 = vsyncpa [#allocation4], 0
    %s18 = scalar_lea.sflag [#allocation4], 1
    %19 = vsyncpa %s18, 0
    %20 = vsyncpa [#allocation7], 0
    %s21 = scalar_lea.sflag [#allocation7], 1
    %22 = vsyncpa %s21, 0
    loop: start=0, step=1, limit=4
    $region2: #{tpu_custom_call.1} parent=1 // loop_pre_header
      _
    $region3: #{tpu_custom_call.1} parent=1 // loop_header
      %s24 = sphi 0, %s28
      %p25 = scmp.ge.s32.totalorder %s24, 4
      %s34 = sphi 0, %s36
      %s37 = sphi 0, %s34
      %s38 = sphi 0, %s37
      %s54 = sphi 0, %s38
      %s60 = sphi 0, %s62
      %s63 = sphi 0, %s60
      %s64 = sphi 0, %s63
      %s80 = sphi 0, %s64
      %s86 = sphi 0, %s88
      %s89 = sphi 0, %s86
      %s90 = sphi 0, %s89
      %s106 = sphi 0, %s90
      %s110 = sphi 0, %s110
      %s112 = sphi 0, %s110
      %s113 = sphi 0, %s112
      %s127 = sphi 0, %s113
      %s131 = sphi 0, %s131
      %s133 = sphi 0, %s131
      %s134 = sphi 0, %s133
      %s148 = sphi 0, %s134
      %s152 = sphi 0, %s152
      %s154 = sphi 0, %s152
      %s155 = sphi 0, %s154
      %s169 = sphi 0, %s155
      %s173 = sphi 0, %s173
      %s175 = sphi 0, %s173
      %s176 = sphi 0, %s175
      %s190 = sphi 0, %s176
      %s194 = sphi 0, %s194
      %s196 = sphi 0, %s194
      %s197 = sphi 0, %s196
      %s211 = sphi 0, %s197
      %s215 = sphi 0, %s215
      %s217 = sphi 0, %s215
      %s218 = sphi 0, %s217
      %s232 = sphi 0, %s218
      %s238 = sphi 0, %s240
      %s241 = sphi 0, %s238
      %s242 = sphi 0, %s241
      %s258 = sphi 0, %s242
      %s264 = sphi 0, %s266
      %s267 = sphi 0, %s264
      %s268 = sphi 0, %s267
      %s284 = sphi 0, %s268
    $region4: #{tpu_custom_call.1} parent=1 // loop_header_branch
      %27 = sbr.rel (%p25) target = $region8
    $region5: #{tpu_custom_call.1} parent=1 // loop_body
      %s29 = ssub.s32 %s24, 1
      %s30 = ssub.s32 %s24, 2
      %s31 = sadd.s32 %s24, 1
      %s32 = ssub.s32 %s24, %s31
      %p33 = scmp.eq.s32.totalorder %s32, 0
      %s35 = sadd.s32 %s34, 1
      %s36 = scalar_select %p33, %s34, %s35
      %p39 = pneg %p33
      %p40 = scmp.eq.s32.totalorder %s24, 1
      %p41 = por %p39, %p40
      %p42 = scmp.ne.s32.totalorder %s34, %s37
      %p43 = scmp.eq.s32.totalorder %s24, 0
      %p44 = por %p42, %p43
      %p45 = scmp.ne.s32.totalorder %s34, %s37
      %p46 = scmp.eq.s32.totalorder %s29, 1
      %p47 = por %p45, %p46
      %p48 = scmp.ne.s32.totalorder %s37, %s38
      %p49 = scmp.eq.s32.totalorder %s29, 0
      %p50 = por %p48, %p49
      %p51 = scmp.ne.s32.totalorder %s37, %s38
      %p52 = scmp.eq.s32.totalorder %s30, 1
      %p53 = por %p51, %p52
      %p55 = scmp.ne.s32.totalorder %s38, %s54
      %p56 = scmp.eq.s32.totalorder %s30, 0
      %p57 = por %p55, %p56
      %s58 = ssub.s32 %s24, %s31
      %p59 = scmp.eq.s32.totalorder %s58, 0
      %s61 = sadd.s32 %s60, 1
      %s62 = scalar_select %p59, %s60, %s61
      %p65 = pneg %p59
      %p66 = scmp.eq.s32.totalorder %s24, 1
      %p67 = por %p65, %p66
      %p68 = scmp.ne.s32.totalorder %s60, %s63
      %p69 = scmp.eq.s32.totalorder %s24, 0
      %p70 = por %p68, %p69
      %p71 = scmp.ne.s32.totalorder %s60, %s63
      %p72 = scmp.eq.s32.totalorder %s29, 1
      %p73 = por %p71, %p72
      %p74 = scmp.ne.s32.totalorder %s63, %s64
      %p75 = scmp.eq.s32.totalorder %s29, 0
      %p76 = por %p74, %p75
      %p77 = scmp.ne.s32.totalorder %s63, %s64
      %p78 = scmp.eq.s32.totalorder %s30, 1
      %p79 = por %p77, %p78
      %p81 = scmp.ne.s32.totalorder %s64, %s80
      %p82 = scmp.eq.s32.totalorder %s30, 0
      %p83 = por %p81, %p82
      %s84 = ssub.s32 %s24, %s31
      %p85 = scmp.eq.s32.totalorder %s84, 0
      %s87 = sadd.s32 %s86, 1
      %s88 = scalar_select %p85, %s86, %s87
      %p91 = pneg %p85
      %p92 = scmp.eq.s32.totalorder %s24, 1
      %p93 = por %p91, %p92
      %p94 = scmp.ne.s32.totalorder %s86, %s89
      %p95 = scmp.eq.s32.totalorder %s24, 0
      %p96 = por %p94, %p95
      %p97 = scmp.ne.s32.totalorder %s86, %s89
      %p98 = scmp.eq.s32.totalorder %s29, 1
      %p99 = por %p97, %p98
      %p100 = scmp.ne.s32.totalorder %s89, %s90
      %p101 = scmp.eq.s32.totalorder %s29, 0
      %p102 = por %p100, %p101
      %p103 = scmp.ne.s32.totalorder %s89, %s90
      %p104 = scmp.eq.s32.totalorder %s30, 1
      %p105 = por %p103, %p104
      %p107 = scmp.ne.s32.totalorder %s90, %s106
      %p108 = scmp.eq.s32.totalorder %s30, 0
      %p109 = por %p107, %p108
      %s111 = sadd.s32 %s110, 1
      %p114 = scmp.eq.s32.totalorder %s24, 1
      %p115 = scmp.ne.s32.totalorder %s110, %s112
      %p116 = scmp.eq.s32.totalorder %s24, 0
      %p117 = por %p115, %p116
      %p118 = scmp.ne.s32.totalorder %s110, %s112
      %p119 = scmp.eq.s32.totalorder %s29, 1
      %p120 = por %p118, %p119
      %p121 = scmp.ne.s32.totalorder %s112, %s113
      %p122 = scmp.eq.s32.totalorder %s29, 0
      %p123 = por %p121, %p122
      %p124 = scmp.ne.s32.totalorder %s112, %s113
      %p125 = scmp.eq.s32.totalorder %s30, 1
      %p126 = por %p124, %p125
      %p128 = scmp.ne.s32.totalorder %s113, %s127
      %p129 = scmp.eq.s32.totalorder %s30, 0
      %p130 = por %p128, %p129
      %s132 = sadd.s32 %s131, 1
      %p135 = scmp.eq.s32.totalorder %s24, 1
      %p136 = scmp.ne.s32.totalorder %s131, %s133
      %p137 = scmp.eq.s32.totalorder %s24, 0
      %p138 = por %p136, %p137
      %p139 = scmp.ne.s32.totalorder %s131, %s133
      %p140 = scmp.eq.s32.totalorder %s29, 1
      %p141 = por %p139, %p140
      %p142 = scmp.ne.s32.totalorder %s133, %s134
      %p143 = scmp.eq.s32.totalorder %s29, 0
      %p144 = por %p142, %p143
      %p145 = scmp.ne.s32.totalorder %s133, %s134
      %p146 = scmp.eq.s32.totalorder %s30, 1
      %p147 = por %p145, %p146
      %p149 = scmp.ne.s32.totalorder %s134, %s148
      %p150 = scmp.eq.s32.totalorder %s30, 0
      %p151 = por %p149, %p150
      %s153 = sadd.s32 %s152, 1
      %p156 = scmp.eq.s32.totalorder %s24, 1
      %p157 = scmp.ne.s32.totalorder %s152, %s154
      %p158 = scmp.eq.s32.totalorder %s24, 0
      %p159 = por %p157, %p158
      %p160 = scmp.ne.s32.totalorder %s152, %s154
      %p161 = scmp.eq.s32.totalorder %s29, 1
      %p162 = por %p160, %p161
      %p163 = scmp.ne.s32.totalorder %s154, %s155
      %p164 = scmp.eq.s32.totalorder %s29, 0
      %p165 = por %p163, %p164
      %p166 = scmp.ne.s32.totalorder %s154, %s155
      %p167 = scmp.eq.s32.totalorder %s30, 1
      %p168 = por %p166, %p167
      %p170 = scmp.ne.s32.totalorder %s155, %s169
      %p171 = scmp.eq.s32.totalorder %s30, 0
      %p172 = por %p170, %p171
      %s174 = sadd.s32 %s173, 1
      %p177 = scmp.eq.s32.totalorder %s24, 1
      %p178 = scmp.ne.s32.totalorder %s173, %s175
      %p179 = scmp.eq.s32.totalorder %s24, 0
      %p180 = por %p178, %p179
      %p181 = scmp.ne.s32.totalorder %s173, %s175
      %p182 = scmp.eq.s32.totalorder %s29, 1
      %p183 = por %p181, %p182
      %p184 = scmp.ne.s32.totalorder %s175, %s176
      %p185 = scmp.eq.s32.totalorder %s29, 0
      %p186 = por %p184, %p185
      %p187 = scmp.ne.s32.totalorder %s175, %s176
      %p188 = scmp.eq.s32.totalorder %s30, 1
      %p189 = por %p187, %p188
      %p191 = scmp.ne.s32.totalorder %s176, %s190
      %p192 = scmp.eq.s32.totalorder %s30, 0
      %p193 = por %p191, %p192
      %s195 = sadd.s32 %s194, 1
      %p198 = scmp.eq.s32.totalorder %s24, 1
      %p199 = scmp.ne.s32.totalorder %s194, %s196
      %p200 = scmp.eq.s32.totalorder %s24, 0
      %p201 = por %p199, %p200
      %p202 = scmp.ne.s32.totalorder %s194, %s196
      %p203 = scmp.eq.s32.totalorder %s29, 1
      %p204 = por %p202, %p203
      %p205 = scmp.ne.s32.totalorder %s196, %s197
      %p206 = scmp.eq.s32.totalorder %s29, 0
      %p207 = por %p205, %p206
      %p208 = scmp.ne.s32.totalorder %s196, %s197
      %p209 = scmp.eq.s32.totalorder %s30, 1
      %p210 = por %p208, %p209
      %p212 = scmp.ne.s32.totalorder %s197, %s211
      %p213 = scmp.eq.s32.totalorder %s30, 0
      %p214 = por %p212, %p213
      %s216 = sadd.s32 %s215, 1
      %p219 = scmp.eq.s32.totalorder %s24, 1
      %p220 = scmp.ne.s32.totalorder %s215, %s217
      %p221 = scmp.eq.s32.totalorder %s24, 0
      %p222 = por %p220, %p221
      %p223 = scmp.ne.s32.totalorder %s215, %s217
      %p224 = scmp.eq.s32.totalorder %s29, 1
      %p225 = por %p223, %p224
      %p226 = scmp.ne.s32.totalorder %s217, %s218
      %p227 = scmp.eq.s32.totalorder %s29, 0
      %p228 = por %p226, %p227
      %p229 = scmp.ne.s32.totalorder %s217, %s218
      %p230 = scmp.eq.s32.totalorder %s30, 1
      %p231 = por %p229, %p230
      %p233 = scmp.ne.s32.totalorder %s218, %s232
      %p234 = scmp.eq.s32.totalorder %s30, 0
      %p235 = por %p233, %p234
      %s236 = ssub.s32 %s24, %s31
      %p237 = scmp.eq.s32.totalorder %s236, 0
      %s239 = sadd.s32 %s238, 1
      %s240 = scalar_select %p237, %s238, %s239
      %p243 = pneg %p237
      %p244 = scmp.eq.s32.totalorder %s24, 1
      %p245 = por %p243, %p244
      %p246 = scmp.ne.s32.totalorder %s238, %s241
      %p247 = scmp.eq.s32.totalorder %s24, 0
      %p248 = por %p246, %p247
      %p249 = scmp.ne.s32.totalorder %s238, %s241
      %p250 = scmp.eq.s32.totalorder %s29, 1
      %p251 = por %p249, %p250
      %p252 = scmp.ne.s32.totalorder %s241, %s242
      %p253 = scmp.eq.s32.totalorder %s29, 0
      %p254 = por %p252, %p253
      %p255 = scmp.ne.s32.totalorder %s241, %s242
      %p256 = scmp.eq.s32.totalorder %s30, 1
      %p257 = por %p255, %p256
      %p259 = scmp.ne.s32.totalorder %s242, %s258
      %p260 = scmp.eq.s32.totalorder %s30, 0
      %p261 = por %p259, %p260
      %s262 = ssub.s32 %s24, %s31
      %p263 = scmp.eq.s32.totalorder %s262, 0
      %s265 = sadd.s32 %s264, 1
      %s266 = scalar_select %p263, %s264, %s265
      %p269 = pneg %p263
      %p270 = scmp.eq.s32.totalorder %s24, 1
      %p271 = por %p269, %p270
      %p272 = scmp.ne.s32.totalorder %s264, %s267
      %p273 = scmp.eq.s32.totalorder %s24, 0
      %p274 = por %p272, %p273
      %p275 = scmp.ne.s32.totalorder %s264, %s267
      %p276 = scmp.eq.s32.totalorder %s29, 1
      %p277 = por %p275, %p276
      %p278 = scmp.ne.s32.totalorder %s267, %s268
      %p279 = scmp.eq.s32.totalorder %s29, 0
      %p280 = por %p278, %p279
      %p281 = scmp.ne.s32.totalorder %s267, %s268
      %p282 = scmp.eq.s32.totalorder %s30, 1
      %p283 = por %p281, %p282
      %p285 = scmp.ne.s32.totalorder %s268, %s284
      %p286 = scmp.eq.s32.totalorder %s30, 0
      %p287 = por %p285, %p286
      %p288 = scmp.le.s32.totalorder 1, %s24
      %p289 = scmp.lt.s32.totalorder %s24, 3
      %p290 = pnand %p288, %p289
      %p291 = pneg %p290
      // Predicated region
      $region9: #{tpu_custom_call.1} parent=5 // pred_check
        _
      $region10: #{tpu_custom_call.1} parent=5 // pred_check_branch
        %293 = sbr.rel (%p290) target = $region12
      $region11: #{tpu_custom_call.1} parent=5 // pred_region
        %s294 = ssub.s32 %s24, 1
        // Predicated region
        $region13: #{tpu_custom_call.1} parent=11 // pred_check
          %p295 = pneg %p123
        $region14: #{tpu_custom_call.1} parent=11 // pred_check_branch
          %297 = sbr.rel (%p295) target = $region16
        $region15: #{tpu_custom_call.1} parent=11 // pred_region
          _
        $region16: #{tpu_custom_call.1} parent=11 // pred_fallthru
          _
        // Predicated region
        $region17: #{tpu_custom_call.1} parent=11 // pred_check
          %p298 = pneg %p144
        $region18: #{tpu_custom_call.1} parent=11 // pred_check_branch
          %300 = sbr.rel (%p298) target = $region20
        $region19: #{tpu_custom_call.1} parent=11 // pred_region
          _
        $region20: #{tpu_custom_call.1} parent=11 // pred_fallthru
          _
        // Predicated region
        $region21: #{tpu_custom_call.1} parent=11 // pred_check
          %p301 = pneg %p165
        $region22: #{tpu_custom_call.1} parent=11 // pred_check_branch
          %303 = sbr.rel (%p301) target = $region24
        $region23: #{tpu_custom_call.1} parent=11 // pred_region
          %305 = vsyncadd [#allocation3], 0
          %s306 = sshll.u32 %s5, 4
          %s307 = int_to_ptr.hbm [resolvable:$true] %s306
          %s308 = sshll.u32 [#allocation2], 4
          %s309 = int_to_ptr.vmem [resolvable:$true] %s308
          %314 = dma.hbm_to_vmem [thread:$0]  %s307, 256, %s309, [#allocation3], 64, 64, 4
        $region24: #{tpu_custom_call.1} parent=11 // pred_fallthru
          _
        // Predicated region
        $region25: #{tpu_custom_call.1} parent=11 // pred_check
          %p315 = pneg %p186
        $region26: #{tpu_custom_call.1} parent=11 // pred_check_branch
          %317 = sbr.rel (%p315) target = $region28
        $region27: #{tpu_custom_call.1} parent=11 // pred_region
          _
        $region28: #{tpu_custom_call.1} parent=11 // pred_fallthru
          _
        // Predicated region
        $region29: #{tpu_custom_call.1} parent=11 // pred_check
          %p318 = pneg %p207
        $region30: #{tpu_custom_call.1} parent=11 // pred_check_branch
          %320 = sbr.rel (%p318) target = $region32
        $region31: #{tpu_custom_call.1} parent=11 // pred_region
          _
        $region32: #{tpu_custom_call.1} parent=11 // pred_fallthru
          _
        // Predicated region
        $region33: #{tpu_custom_call.1} parent=11 // pred_check
          %p321 = pneg %p228
        $region34: #{tpu_custom_call.1} parent=11 // pred_check_branch
          %323 = sbr.rel (%p321) target = $region36
        $region35: #{tpu_custom_call.1} parent=11 // pred_region
          _
        $region36: #{tpu_custom_call.1} parent=11 // pred_fallthru
          _
      $region12: #{tpu_custom_call.1} parent=5 // pred_fallthru
        _
      %p324 = scmp.lt.s32.totalorder %s24, 2
      // Predicated region
      $region37: #{tpu_custom_call.1} parent=5 // pred_check
        %p325 = pneg %p324
      $region38: #{tpu_custom_call.1} parent=5 // pred_check_branch
        %327 = sbr.rel (%p325) target = $region40
      $region39: #{tpu_custom_call.1} parent=5 // pred_region
        // Predicated region
        $region41: #{tpu_custom_call.1} parent=39 // pred_check
          %p328 = pneg %p44
        $region42: #{tpu_custom_call.1} parent=39 // pred_check_branch
          %330 = sbr.rel (%p328) target = $region44
        $region43: #{tpu_custom_call.1} parent=39 // pred_region
          %p331 = scmp.lt.s32.totalorder %s24, 1
          %s332 = scalar_select %p331, %s24, 1
          %s333 = smul.addr %s332, 8
          %s334 = scalar_lea.vmem %s0, %s333
        $region44: #{tpu_custom_call.1} parent=39 // pred_fallthru
          _
        // Predicated region
        $region45: #{tpu_custom_call.1} parent=39 // pred_check
          %p335 = pneg %p70
        $region46: #{tpu_custom_call.1} parent=39 // pred_check_branch
          %337 = sbr.rel (%p335) target = $region48
        $region47: #{tpu_custom_call.1} parent=39 // pred_region
          %p338 = scmp.lt.s32.totalorder %s24, 1
          %s339 = scalar_select %p338, %s24, 1
          %s340 = smul.addr %s339, 8
          %s341 = scalar_lea.vmem %s1, %s340
        $region48: #{tpu_custom_call.1} parent=39 // pred_fallthru
          _
        // Predicated region
        $region49: #{tpu_custom_call.1} parent=39 // pred_check
          %p342 = pneg %p96
        $region50: #{tpu_custom_call.1} parent=39 // pred_check_branch
          %344 = sbr.rel (%p342) target = $region52
        $region51: #{tpu_custom_call.1} parent=39 // pred_region
          %p345 = scmp.lt.s32.totalorder %s24, 1
          %s346 = scalar_select %p345, %s24, 1
          %s347 = smul.addr %s346, 8
          %s348 = scalar_lea.vmem %s2, %s347
        $region52: #{tpu_custom_call.1} parent=39 // pred_fallthru
          _
      $region40: #{tpu_custom_call.1} parent=5 // pred_fallthru
        _
      %p349 = scmp.le.s32.totalorder 1, %s24
      %p350 = scmp.lt.s32.totalorder %s24, 3
      %p351 = pnand %p349, %p350
      %p352 = pneg %p351
      // Predicated region
      $region53: #{tpu_custom_call.1} parent=5 // pred_check
        _
      $region54: #{tpu_custom_call.1} parent=5 // pred_check_branch
        %354 = sbr.rel (%p351) target = $region56
      $region55: #{tpu_custom_call.1} parent=5 // pred_region
        %s355 = ssub.s32 %s24, 1
        // Predicated region
        $region57: #{tpu_custom_call.1} parent=55 // pred_check
          %p356 = pneg %p165
        $region58: #{tpu_custom_call.1} parent=55 // pred_check_branch
          %358 = sbr.rel (%p356) target = $region60
        $region59: #{tpu_custom_call.1} parent=55 // pred_region
          %360 = dma.done [#allocation3], 256
        $region60: #{tpu_custom_call.1} parent=55 // pred_fallthru
          _
        %p361 = scmp.lt.s32.totalorder %s29, 1
        %s362 = scalar_select %p361, %s29, 1
        %s363 = smul.addr %s362, 8
        %s364 = scalar_lea.vmem %s0, %s363
        %p365 = pneg %p50
        %p366 = pneg %p47
        %p367 = scmp.lt.s32.totalorder %s29, 1
        %s368 = scalar_select %p367, %s29, 1
        %s369 = smul.addr %s368, 8
        %s370 = scalar_lea.vmem %s1, %s369
        %p371 = pneg %p76
        %p372 = pneg %p73
        %p373 = scmp.lt.s32.totalorder %s29, 1
        %s374 = scalar_select %p373, %s29, 1
        %s375 = smul.addr %s374, 8
        %s376 = scalar_lea.vmem %s2, %s375
        %p377 = pneg %p102
        %p378 = pneg %p99
        %p379 = pneg %p123
        %p380 = pneg %p120
        %p381 = pneg %p144
        %p382 = pneg %p141
        %p383 = pneg %p165
        %p384 = pneg %p162
        %p385 = pneg %p186
        %p386 = pneg %p183
        %p387 = pneg %p207
        %p388 = pneg %p204
        %p389 = pneg %p228
        %p390 = pneg %p225
        %p391 = pneg %p254
        %p392 = pneg %p251
        %s393 = sand.u32 %s241, 1
        %s394 = scalar_lea.sflag [#allocation4], %s393
        %s395 = sand.u32 %s241, 1
        %s396 = smul.addr %s395, 8
        %s397 = scalar_lea.vmem [#allocation5], %s396
        %p398 = pneg %p280
        %p399 = pneg %p277
        %s400 = sand.u32 %s267, 1
        %s401 = scalar_lea.sflag [#allocation7], %s400
        %s402 = sand.u32 %s267, 1
        %s403 = smul.addr %s402, 32
        %s404 = scalar_lea.vmem [#allocation6], %s403
        %p405 = scmp.lt.s32.totalorder %s29, 1
        %s406 = scalar_select %p405, %s29, 1
        %s407 = smul.addr %s406, 8
        %s408 = scalar_lea.vmem %s0, %s407
        %p409 = scmp.lt.s32.totalorder %s29, 1
        %s410 = scalar_select %p409, %s29, 1
        %s411 = smul.addr %s410, 8
        %s412 = scalar_lea.vmem %s1, %s411
        %p413 = scmp.lt.s32.totalorder %s29, 1
        %s414 = scalar_select %p413, %s29, 1
        %s415 = smul.addr %s414, 8
        %s416 = scalar_lea.vmem %s2, %s415
        %v418 = vld [vmem:[%s408] sm:$0xff]
        %v419 = vld [vmem:[%s412] sm:$0xff]
        %v420 = vld [vmem:[%s416] sm:$0xff]
        %v421 = vld [vmem:[%s3] sm:$0xf]
        %v422 = vld [vmem:[%s3 + $0x4] sm:$0xf]
        %v423 = vld [vmem:[%s3 + $0x8] sm:$0xf]
        %v424 = vld [vmem:[%s3 + $0xc] sm:$0xf]
        %v425 = vld [vmem:[%s4] sm:$0xf]
        %v426 = vld [vmem:[%s4 + $0x4] sm:$0xf]
        %v427 = vld [vmem:[%s4 + $0x8] sm:$0xf]
        %v428 = vld [vmem:[%s4 + $0xc] sm:$0xf]
        %v429 = vld [vmem:[#allocation2] sm:$0xf]
        %v430 = vld [vmem:[#allocation2 + $0x4] sm:$0xf]
        %v431 = vld [vmem:[#allocation2 + $0x8] sm:$0xf]
        %v432 = vld [vmem:[#allocation2 + $0xc] sm:$0xf]
        %v433 = vld [vmem:[%s6] sm:$0xf]
        %v434 = vld [vmem:[%s6 + $0x4] sm:$0xf]
        %v435 = vld [vmem:[%s6 + $0x8] sm:$0xf]
        %v436 = vld [vmem:[%s6 + $0xc] sm:$0xf]
        %v437 = vld [vmem:[%s6 + $0x10] sm:$0xf]
        %v438 = vld [vmem:[%s6 + $0x14] sm:$0xf]
        %v439 = vld [vmem:[%s6 + $0x18] sm:$0xf]
        %v440 = vld [vmem:[%s6 + $0x1c] sm:$0xf]
        %v441 = vld [vmem:[%s6 + $0x20] sm:$0xf]
        %v442 = vld [vmem:[%s6 + $0x24] sm:$0xf]
        %v443 = vld [vmem:[%s6 + $0x28] sm:$0xf]
        %v444 = vld [vmem:[%s6 + $0x2c] sm:$0xf]
        %v445 = vld [vmem:[%s6 + $0x30] sm:$0xf]
        %v446 = vld [vmem:[%s6 + $0x34] sm:$0xf]
        %v447 = vld [vmem:[%s6 + $0x38] sm:$0xf]
        %v448 = vld [vmem:[%s6 + $0x3c] sm:$0xf]
        %v449 = vpack.c.bf16 %v418, %v418
        %v450 = vpack.c.bf16 %v419, %v419
        %v451 = vpack.c.bf16 %v420, %v420
        %vm452 = vcmask 261120
        %v454 = vsel %vm452, %v449, 0
        %v457 = vsel %vm452, %v421, 0
        %459 = vmatpush.bf16.xpose.msra.mxu0 0
        %460 = vmatpush.bf16.xpose.msra.mxu0 0
        %461 = vmatpush.bf16.xpose.msra.mxu0 0
        %462 = vmatpush.bf16.xpose.msra.mxu0 0
        %463 = vmatpush.bf16.xpose.msra.mxu0 0
        %464 = vmatpush.bf16.xpose.msra.mxu0 0
        %465 = vmatpush.bf16.xpose.msra.mxu0 0
        %466 = vmatpush.bf16.xpose.msra.mxu0 %v457
        %467 = vmatmul.bf16.gmra.mxu0 %v454
        %v468 = vpop.f32.mrf.mxu0
        %v469 = vadd.f32 0.0, %v468
        %v470 = vpop.f32.mrf.mxu0
        %471 = vdwg.mxu0
        %v473 = vsel %vm452, %v422, 0
        %475 = vmatpush.bf16.xpose.msra.mxu0 0
        %476 = vmatpush.bf16.xpose.msra.mxu0 0
        %477 = vmatpush.bf16.xpose.msra.mxu0 0
        %478 = vmatpush.bf16.xpose.msra.mxu0 0
        %479 = vmatpush.bf16.xpose.msra.mxu0 0
        %480 = vmatpush.bf16.xpose.msra.mxu0 0
        %481 = vmatpush.bf16.xpose.msra.mxu0 0
        %482 = vmatpush.bf16.xpose.msra.mxu0 %v473
        %483 = vmatmul.bf16.gmra.mxu0 %v454
        %v484 = vpop.f32.mrf.mxu0
        %v485 = vadd.f32 0.0, %v484
        %v486 = vpop.f32.mrf.mxu0
        %487 = vdwg.mxu0
        %v489 = vsel %vm452, %v423, 0
        %491 = vmatpush.bf16.xpose.msra.mxu0 0
        %492 = vmatpush.bf16.xpose.msra.mxu0 0
        %493 = vmatpush.bf16.xpose.msra.mxu0 0
        %494 = vmatpush.bf16.xpose.msra.mxu0 0
        %495 = vmatpush.bf16.xpose.msra.mxu0 0
        %496 = vmatpush.bf16.xpose.msra.mxu0 0
        %497 = vmatpush.bf16.xpose.msra.mxu0 0
        %498 = vmatpush.bf16.xpose.msra.mxu0 %v489
        %499 = vmatmul.bf16.gmra.mxu0 %v454
        %v500 = vpop.f32.mrf.mxu0
        %v501 = vadd.f32 0.0, %v500
        %v502 = vpop.f32.mrf.mxu0
        %503 = vdwg.mxu0
        %v505 = vsel %vm452, %v424, 0
        %507 = vmatpush.bf16.xpose.msra.mxu0 0
        %508 = vmatpush.bf16.xpose.msra.mxu0 0
        %509 = vmatpush.bf16.xpose.msra.mxu0 0
        %510 = vmatpush.bf16.xpose.msra.mxu0 0
        %511 = vmatpush.bf16.xpose.msra.mxu0 0
        %512 = vmatpush.bf16.xpose.msra.mxu0 0
        %513 = vmatpush.bf16.xpose.msra.mxu0 0
        %514 = vmatpush.bf16.xpose.msra.mxu0 %v505
        %515 = vmatmul.bf16.gmra.mxu0 %v454
        %v516 = vpop.f32.mrf.mxu0
        %v517 = vadd.f32 0.0, %v516
        %v518 = vpop.f32.mrf.mxu0
        %519 = vdwg.mxu0
        %v521 = vsel %vm452, %v450, 0
        %v524 = vsel %vm452, %v425, 0
        %526 = vmatpush.bf16.xpose.msra.mxu0 0
        %527 = vmatpush.bf16.xpose.msra.mxu0 0
        %528 = vmatpush.bf16.xpose.msra.mxu0 0
        %529 = vmatpush.bf16.xpose.msra.mxu0 0
        %530 = vmatpush.bf16.xpose.msra.mxu0 0
        %531 = vmatpush.bf16.xpose.msra.mxu0 0
        %532 = vmatpush.bf16.xpose.msra.mxu0 0
        %533 = vmatpush.bf16.xpose.msra.mxu0 %v524
        %534 = vmatmul.bf16.gmra.mxu0 %v521
        %v535 = vpop.f32.mrf.mxu0
        %v536 = vadd.f32 0.0, %v535
        %v537 = vpop.f32.mrf.mxu0
        %538 = vdwg.mxu0
        %v540 = vsel %vm452, %v426, 0
        %542 = vmatpush.bf16.xpose.msra.mxu0 0
        %543 = vmatpush.bf16.xpose.msra.mxu0 0
        %544 = vmatpush.bf16.xpose.msra.mxu0 0
        %545 = vmatpush.bf16.xpose.msra.mxu0 0
        %546 = vmatpush.bf16.xpose.msra.mxu0 0
        %547 = vmatpush.bf16.xpose.msra.mxu0 0
        %548 = vmatpush.bf16.xpose.msra.mxu0 0
        %549 = vmatpush.bf16.xpose.msra.mxu0 %v540
        %550 = vmatmul.bf16.gmra.mxu0 %v521
        %v551 = vpop.f32.mrf.mxu0
        %v552 = vadd.f32 0.0, %v551
        %v553 = vpop.f32.mrf.mxu0
        %554 = vdwg.mxu0
        %v556 = vsel %vm452, %v427, 0
        %558 = vmatpush.bf16.xpose.msra.mxu0 0
        %559 = vmatpush.bf16.xpose.msra.mxu0 0
        %560 = vmatpush.bf16.xpose.msra.mxu0 0
        %561 = vmatpush.bf16.xpose.msra.mxu0 0
        %562 = vmatpush.bf16.xpose.msra.mxu0 0
        %563 = vmatpush.bf16.xpose.msra.mxu0 0
        %564 = vmatpush.bf16.xpose.msra.mxu0 0
        %565 = vmatpush.bf16.xpose.msra.mxu0 %v556
        %566 = vmatmul.bf16.gmra.mxu0 %v521
        %v567 = vpop.f32.mrf.mxu0
        %v568 = vadd.f32 0.0, %v567
        %v569 = vpop.f32.mrf.mxu0
        %570 = vdwg.mxu0
        %v572 = vsel %vm452, %v428, 0
        %574 = vmatpush.bf16.xpose.msra.mxu0 0
        %575 = vmatpush.bf16.xpose.msra.mxu0 0
        %576 = vmatpush.bf16.xpose.msra.mxu0 0
        %577 = vmatpush.bf16.xpose.msra.mxu0 0
        %578 = vmatpush.bf16.xpose.msra.mxu0 0
        %579 = vmatpush.bf16.xpose.msra.mxu0 0
        %580 = vmatpush.bf16.xpose.msra.mxu0 0
        %581 = vmatpush.bf16.xpose.msra.mxu0 %v572
        %582 = vmatmul.bf16.gmra.mxu0 %v521
        %v583 = vpop.f32.mrf.mxu0
        %v584 = vadd.f32 0.0, %v583
        %v585 = vpop.f32.mrf.mxu0
        %586 = vdwg.mxu0
        %v588 = vsel %vm452, %v451, 0
        %v591 = vsel %vm452, %v429, 0
        %593 = vmatpush.bf16.xpose.msra.mxu0 0
        %594 = vmatpush.bf16.xpose.msra.mxu0 0
        %595 = vmatpush.bf16.xpose.msra.mxu0 0
        %596 = vmatpush.bf16.xpose.msra.mxu0 0
        %597 = vmatpush.bf16.xpose.msra.mxu0 0
        %598 = vmatpush.bf16.xpose.msra.mxu0 0
        %599 = vmatpush.bf16.xpose.msra.mxu0 0
        %600 = vmatpush.bf16.xpose.msra.mxu0 %v591
        %601 = vmatmul.bf16.gmra.mxu0 %v588
        %v602 = vpop.f32.mrf.mxu0
        %v603 = vadd.f32 0.0, %v602
        %v604 = vpop.f32.mrf.mxu0
        %605 = vdwg.mxu0
        %v607 = vsel %vm452, %v430, 0
        %609 = vmatpush.bf16.xpose.msra.mxu0 0
        %610 = vmatpush.bf16.xpose.msra.mxu0 0
        %611 = vmatpush.bf16.xpose.msra.mxu0 0
        %612 = vmatpush.bf16.xpose.msra.mxu0 0
        %613 = vmatpush.bf16.xpose.msra.mxu0 0
        %614 = vmatpush.bf16.xpose.msra.mxu0 0
        %615 = vmatpush.bf16.xpose.msra.mxu0 0
        %616 = vmatpush.bf16.xpose.msra.mxu0 %v607
        %617 = vmatmul.bf16.gmra.mxu0 %v588
        %v618 = vpop.f32.mrf.mxu0
        %v619 = vadd.f32 0.0, %v618
        %v620 = vpop.f32.mrf.mxu0
        %621 = vdwg.mxu0
        %v623 = vsel %vm452, %v431, 0
        %625 = vmatpush.bf16.xpose.msra.mxu0 0
        %626 = vmatpush.bf16.xpose.msra.mxu0 0
        %627 = vmatpush.bf16.xpose.msra.mxu0 0
        %628 = vmatpush.bf16.xpose.msra.mxu0 0
        %629 = vmatpush.bf16.xpose.msra.mxu0 0
        %630 = vmatpush.bf16.xpose.msra.mxu0 0
        %631 = vmatpush.bf16.xpose.msra.mxu0 0
        %632 = vmatpush.bf16.xpose.msra.mxu0 %v623
        %633 = vmatmul.bf16.gmra.mxu0 %v588
        %v634 = vpop.f32.mrf.mxu0
        %v635 = vadd.f32 0.0, %v634
        %v636 = vpop.f32.mrf.mxu0
        %637 = vdwg.mxu0
        %v639 = vsel %vm452, %v432, 0
        %641 = vmatpush.bf16.xpose.msra.mxu0 0
        %642 = vmatpush.bf16.xpose.msra.mxu0 0
        %643 = vmatpush.bf16.xpose.msra.mxu0 0
        %644 = vmatpush.bf16.xpose.msra.mxu0 0
        %645 = vmatpush.bf16.xpose.msra.mxu0 0
        %646 = vmatpush.bf16.xpose.msra.mxu0 0
        %647 = vmatpush.bf16.xpose.msra.mxu0 0
        %648 = vmatpush.bf16.xpose.msra.mxu0 %v639
        %649 = vmatmul.bf16.gmra.mxu0 %v588
        %v650 = vpop.f32.mrf.mxu0
        %v651 = vadd.f32 0.0, %v650
        %v652 = vpop.f32.mrf.mxu0
        %653 = vdwg.mxu0
        %v654 = vmul.f32 %v469, 0.35355338
        %v655 = vmul.f32 %v485, 0.35355338
        %v656 = vmul.f32 %v501, 0.35355338
        %v657 = vmul.f32 %v517, 0.35355338
        %v658 = vpack.c.bf16 %v654, %v654
        %v659 = vpack.c.bf16 %v655, %v655
        %v660 = vpack.c.bf16 %v656, %v656
        %v661 = vpack.c.bf16 %v657, %v657
        %v662 = vpack.c.bf16 %v536, %v536
        %v663 = vpack.c.bf16 %v552, %v552
        %v664 = vpack.c.bf16 %v568, %v568
        %v665 = vpack.c.bf16 %v584, %v584
        %vm666 = vcmask 64512
        %v668 = vsel %vm666, %v658, 0
        %v671 = vsel %vm666, %v662, 0
        %673 = vmatpush.bf16.xpose.msra.mxu0 0
        %674 = vmatpush.bf16.xpose.msra.mxu0 0
        %675 = vmatpush.bf16.xpose.msra.mxu0 0
        %676 = vmatpush.bf16.xpose.msra.mxu0 0
        %677 = vmatpush.bf16.xpose.msra.mxu0 0
        %678 = vmatpush.bf16.xpose.msra.mxu0 0
        %679 = vmatpush.bf16.xpose.msra.mxu0 0
        %680 = vmatpush.bf16.xpose.msra.mxu0 %v671
        %681 = vmatmul.bf16.gmra.mxu0 %v668
        %v682 = vpop.f32.mrf.mxu0
        %v683 = vadd.f32 0.0, %v682
        %v684 = vpop.f32.mrf.mxu0
        %685 = vdwg.mxu0
        %v687 = vsel %vm666, %v659, 0
        %v690 = vsel %vm666, %v663, 0
        %692 = vmatpush.bf16.xpose.msra.mxu0 0
        %693 = vmatpush.bf16.xpose.msra.mxu0 0
        %694 = vmatpush.bf16.xpose.msra.mxu0 0
        %695 = vmatpush.bf16.xpose.msra.mxu0 0
        %696 = vmatpush.bf16.xpose.msra.mxu0 0
        %697 = vmatpush.bf16.xpose.msra.mxu0 0
        %698 = vmatpush.bf16.xpose.msra.mxu0 0
        %699 = vmatpush.bf16.xpose.msra.mxu0 %v690
        %700 = vmatmul.bf16.gmra.mxu0 %v687
        %v701 = vpop.f32.mrf.mxu0
        %v702 = vadd.f32 0.0, %v701
        %v703 = vpop.f32.mrf.mxu0
        %704 = vdwg.mxu0
        %v706 = vsel %vm666, %v660, 0
        %v709 = vsel %vm666, %v664, 0
        %711 = vmatpush.bf16.xpose.msra.mxu0 0
        %712 = vmatpush.bf16.xpose.msra.mxu0 0
        %713 = vmatpush.bf16.xpose.msra.mxu0 0
        %714 = vmatpush.bf16.xpose.msra.mxu0 0
        %715 = vmatpush.bf16.xpose.msra.mxu0 0
        %716 = vmatpush.bf16.xpose.msra.mxu0 0
        %717 = vmatpush.bf16.xpose.msra.mxu0 0
        %718 = vmatpush.bf16.xpose.msra.mxu0 %v709
        %719 = vmatmul.bf16.gmra.mxu0 %v706
        %v720 = vpop.f32.mrf.mxu0
        %v721 = vadd.f32 0.0, %v720
        %v722 = vpop.f32.mrf.mxu0
        %723 = vdwg.mxu0
        %v725 = vsel %vm666, %v661, 0
        %v728 = vsel %vm666, %v665, 0
        %730 = vmatpush.bf16.xpose.msra.mxu0 0
        %731 = vmatpush.bf16.xpose.msra.mxu0 0
        %732 = vmatpush.bf16.xpose.msra.mxu0 0
        %733 = vmatpush.bf16.xpose.msra.mxu0 0
        %734 = vmatpush.bf16.xpose.msra.mxu0 0
        %735 = vmatpush.bf16.xpose.msra.mxu0 0
        %736 = vmatpush.bf16.xpose.msra.mxu0 0
        %737 = vmatpush.bf16.xpose.msra.mxu0 %v728
        %738 = vmatmul.bf16.gmra.mxu0 %v725
        %v739 = vpop.f32.mrf.mxu0
        %v740 = vadd.f32 0.0, %v739
        %v741 = vpop.f32.mrf.mxu0
        %742 = vdwg.mxu0
        %v743 = vsel %vm666, %v683, -inf
        %744 = vmax.xlane.f32.xlu0 %v743
        %v745 = vpop.xlane.xlu0 %744
        %v746 = vsel %vm666, %v702, -inf
        %747 = vmax.xlane.f32.xlu0 %v746
        %v748 = vpop.xlane.xlu0 %747
        %v749 = vsel %vm666, %v721, -inf
        %750 = vmax.xlane.f32.xlu0 %v749
        %v751 = vpop.xlane.xlu0 %750
        %v752 = vsel %vm666, %v740, -inf
        %753 = vmax.xlane.f32.xlu0 %v752
        %v754 = vpop.xlane.xlu0 %753
        %v755 = vsub.f32 %v683, %v745
        %v756 = vsub.f32 %v702, %v748
        %v757 = vsub.f32 %v721, %v751
        %v758 = vsub.f32 %v740, %v754
        %v759 = vmul.f32 %v755, 1.442695
        %v760 = vpow.pop %v759
        %v761 = vmul.f32 %v756, 1.442695
        %v762 = vpow.pop %v761
        %v763 = vmul.f32 %v757, 1.442695
        %v764 = vpow.pop %v763
        %v765 = vmul.f32 %v758, 1.442695
        %v766 = vpow.pop %v765
        %v767 = vsel %vm666, %v760, 0.0
        %768 = vadd.xlane.f32.xlu0 %v767
        %v769 = vpop.xlane.xlu0 %768
        %v770 = vsel %vm666, %v762, 0.0
        %771 = vadd.xlane.f32.xlu0 %v770
        %v772 = vpop.xlane.xlu0 %771
        %v773 = vsel %vm666, %v764, 0.0
        %774 = vadd.xlane.f32.xlu0 %v773
        %v775 = vpop.xlane.xlu0 %774
        %v776 = vsel %vm666, %v766, 0.0
        %777 = vadd.xlane.f32.xlu0 %v776
        %v778 = vpop.xlane.xlu0 %777
        %v779 = vrcp.pop %v769
        %v780 = vrcp.pop %v772
        %v781 = vrcp.pop %v775
        %v782 = vrcp.pop %v778
        %v783 = vmul.f32 %v760, %v779
        %v784 = vmul.f32 %v762, %v780
        %v785 = vmul.f32 %v764, %v781
        %v786 = vmul.f32 %v766, %v782
        %787 = vst.msk [vmem:[%s404] sm:$0xff] %vm666, %v783
        %788 = vst.msk [vmem:[%s404 + $0x8] sm:$0xff] %vm666, %v784
        %789 = vst.msk [vmem:[%s404 + $0x10] sm:$0xff] %vm666, %v785
        %790 = vst.msk [vmem:[%s404 + $0x18] sm:$0xff] %vm666, %v786
        %v791 = vpack.c.bf16 %v783, %v783
        %v792 = vpack.c.bf16 %v784, %v784
        %v793 = vpack.c.bf16 %v785, %v785
        %v794 = vpack.c.bf16 %v786, %v786
        %v795 = vpack.c.bf16 %v603, %v603
        %v796 = vpack.c.bf16 %v619, %v619
        %v797 = vpack.c.bf16 %v635, %v635
        %v798 = vpack.c.bf16 %v651, %v651
        %v800 = vsel %vm666, %v791, 0
        %vm802 = vcmask 1043456
        %v804 = vsel %vm802, %v795, 0
        %806 = vmatpush.bf16.msra.mxu0 0
        %807 = vmatpush.bf16.msra.mxu0 0
        %808 = vmatpush.bf16.msra.mxu0 0
        %809 = vmatpush.bf16.msra.mxu0 0
        %810 = vmatpush.bf16.msra.mxu0 0
        %811 = vmatpush.bf16.msra.mxu0 0
        %812 = vmatpush.bf16.msra.mxu0 0
        %813 = vmatpush.bf16.msra.mxu0 %v804
        %814 = vmatmul.bf16.gmra.mxu0 %v800
        %v815 = vpop.f32.mrf.mxu0
        %v816 = vadd.f32 0.0, %v815
        %v817 = vpop.f32.mrf.mxu0
        %818 = vdwg.mxu0
        %v820 = vsel %vm666, %v792, 0
        %v823 = vsel %vm802, %v796, 0
        %825 = vmatpush.bf16.msra.mxu0 0
        %826 = vmatpush.bf16.msra.mxu0 0
        %827 = vmatpush.bf16.msra.mxu0 0
        %828 = vmatpush.bf16.msra.mxu0 0
        %829 = vmatpush.bf16.msra.mxu0 0
        %830 = vmatpush.bf16.msra.mxu0 0
        %831 = vmatpush.bf16.msra.mxu0 0
        %832 = vmatpush.bf16.msra.mxu0 %v823
        %833 = vmatmul.bf16.gmra.mxu0 %v820
        %v834 = vpop.f32.mrf.mxu0
        %v835 = vadd.f32 0.0, %v834
        %v836 = vpop.f32.mrf.mxu0
        %837 = vdwg.mxu0
        %v839 = vsel %vm666, %v793, 0
        %v842 = vsel %vm802, %v797, 0
        %844 = vmatpush.bf16.msra.mxu0 0
        %845 = vmatpush.bf16.msra.mxu0 0
        %846 = vmatpush.bf16.msra.mxu0 0
        %847 = vmatpush.bf16.msra.mxu0 0
        %848 = vmatpush.bf16.msra.mxu0 0
        %849 = vmatpush.bf16.msra.mxu0 0
        %850 = vmatpush.bf16.msra.mxu0 0
        %851 = vmatpush.bf16.msra.mxu0 %v842
        %852 = vmatmul.bf16.gmra.mxu0 %v839
        %v853 = vpop.f32.mrf.mxu0
        %v854 = vadd.f32 0.0, %v853
        %v855 = vpop.f32.mrf.mxu0
        %856 = vdwg.mxu0
        %v858 = vsel %vm666, %v794, 0
        %v861 = vsel %vm802, %v798, 0
        %863 = vmatpush.bf16.msra.mxu0 0
        %864 = vmatpush.bf16.msra.mxu0 0
        %865 = vmatpush.bf16.msra.mxu0 0
        %866 = vmatpush.bf16.msra.mxu0 0
        %867 = vmatpush.bf16.msra.mxu0 0
        %868 = vmatpush.bf16.msra.mxu0 0
        %869 = vmatpush.bf16.msra.mxu0 0
        %870 = vmatpush.bf16.msra.mxu0 %v861
        %871 = vmatmul.bf16.gmra.mxu0 %v858
        %v872 = vpop.f32.mrf.mxu0
        %v873 = vadd.f32 0.0, %v872
        %v874 = vpop.f32.mrf.mxu0
        %875 = vdwg.mxu0
        %v876 = vpack.c.bf16 %v816, %v816
        %v877 = vpack.c.bf16 %v835, %v835
        %v878 = vpack.c.bf16 %v854, %v854
        %v879 = vpack.c.bf16 %v873, %v873
        %v884 = vunpack.c.l.b16 %v433
        %v885 = vunpack.c.l.b16 %v434
        %v886 = vunpack.c.l.b16 %v435
        %v887 = vunpack.c.l.b16 %v436
        %v888 = vpack.c.b16 %v885, %v884
        %v889 = vpack.c.b16 %v887, %v886
        %v891 = vsel %vm666, %v876, 0
        %v894 = vsel %vm666, %v888, 0
        %v897 = vsel %vm666, %v889, 0
        %899 = vmatpush.bf16.xpose.msra.mxu0 0
        %900 = vmatpush.bf16.xpose.msra.mxu0 0
        %901 = vmatpush.bf16.xpose.msra.mxu0 0
        %902 = vmatpush.bf16.xpose.msra.mxu0 0
        %903 = vmatpush.bf16.xpose.msra.mxu0 0
        %904 = vmatpush.bf16.xpose.msra.mxu0 0
        %905 = vmatpush.bf16.xpose.msra.mxu0 %v897
        %906 = vmatpush.bf16.xpose.msra.mxu0 %v894
        %907 = vmatmul.bf16.gmra.mxu0 %v891
        %v908 = vpop.f32.mrf.mxu0
        %v909 = vadd.f32 0.0, %v908
        %v910 = vpop.f32.mrf.mxu0
        %911 = vdwg.mxu0
        %v916 = vunpack.c.l.b16 %v437
        %v917 = vunpack.c.l.b16 %v438
        %v918 = vunpack.c.l.b16 %v439
        %v919 = vunpack.c.l.b16 %v440
        %v920 = vpack.c.b16 %v917, %v916
        %v921 = vpack.c.b16 %v919, %v918
        %v923 = vsel %vm666, %v877, 0
        %v926 = vsel %vm666, %v920, 0
        %v929 = vsel %vm666, %v921, 0
        %931 = vmatpush.bf16.xpose.msra.mxu0 0
        %932 = vmatpush.bf16.xpose.msra.mxu0 0
        %933 = vmatpush.bf16.xpose.msra.mxu0 0
        %934 = vmatpush.bf16.xpose.msra.mxu0 0
        %935 = vmatpush.bf16.xpose.msra.mxu0 0
        %936 = vmatpush.bf16.xpose.msra.mxu0 0
        %937 = vmatpush.bf16.xpose.msra.mxu0 %v929
        %938 = vmatpush.bf16.xpose.msra.mxu0 %v926
        %939 = vmatmul.bf16.gmra.mxu0 %v923
        %v940 = vpop.f32.mrf.mxu0
        %v941 = vadd.f32 0.0, %v940
        %v942 = vpop.f32.mrf.mxu0
        %943 = vdwg.mxu0
        %v948 = vunpack.c.l.b16 %v441
        %v949 = vunpack.c.l.b16 %v442
        %v950 = vunpack.c.l.b16 %v443
        %v951 = vunpack.c.l.b16 %v444
        %v952 = vpack.c.b16 %v949, %v948
        %v953 = vpack.c.b16 %v951, %v950
        %v955 = vsel %vm666, %v878, 0
        %v958 = vsel %vm666, %v952, 0
        %v961 = vsel %vm666, %v953, 0
        %963 = vmatpush.bf16.xpose.msra.mxu0 0
        %964 = vmatpush.bf16.xpose.msra.mxu0 0
        %965 = vmatpush.bf16.xpose.msra.mxu0 0
        %966 = vmatpush.bf16.xpose.msra.mxu0 0
        %967 = vmatpush.bf16.xpose.msra.mxu0 0
        %968 = vmatpush.bf16.xpose.msra.mxu0 0
        %969 = vmatpush.bf16.xpose.msra.mxu0 %v961
        %970 = vmatpush.bf16.xpose.msra.mxu0 %v958
        %971 = vmatmul.bf16.gmra.mxu0 %v955
        %v972 = vpop.f32.mrf.mxu0
        %v973 = vadd.f32 0.0, %v972
        %v974 = vpop.f32.mrf.mxu0
        %975 = vdwg.mxu0
        %v980 = vunpack.c.l.b16 %v445
        %v981 = vunpack.c.l.b16 %v446
        %v982 = vunpack.c.l.b16 %v447
        %v983 = vunpack.c.l.b16 %v448
        %v984 = vpack.c.b16 %v981, %v980
        %v985 = vpack.c.b16 %v983, %v982
        %v987 = vsel %vm666, %v879, 0
        %v990 = vsel %vm666, %v984, 0
        %v993 = vsel %vm666, %v985, 0
        %995 = vmatpush.bf16.xpose.msra.mxu0 0
        %996 = vmatpush.bf16.xpose.msra.mxu0 0
        %997 = vmatpush.bf16.xpose.msra.mxu0 0
        %998 = vmatpush.bf16.xpose.msra.mxu0 0
        %999 = vmatpush.bf16.xpose.msra.mxu0 0
        %1000 = vmatpush.bf16.xpose.msra.mxu0 0
        %1001 = vmatpush.bf16.xpose.msra.mxu0 %v993
        %1002 = vmatpush.bf16.xpose.msra.mxu0 %v990
        %1003 = vmatmul.bf16.gmra.mxu0 %v987
        %v1004 = vpop.f32.mrf.mxu0
        %v1005 = vadd.f32 0.0, %v1004
        %v1006 = vpop.f32.mrf.mxu0
        %1007 = vdwg.mxu0
        %v1008 = vsel %vm452, %v909, 0.0
        %v1009 = vsel %vm452, %v941, 0.0
        %v1010 = vadd.f32 %v1008, %v1009
        %v1011 = vsel %vm452, %v973, 0.0
        %v1012 = vadd.f32 %v1010, %v1011
        %v1013 = vsel %vm452, %v1005, 0.0
        %v1014 = vadd.f32 %v1012, %v1013
        %v1015 = vadd.f32 %v1014, %v418
        %v1016 = vsel %vm452, %v1015, 0.0
        %1017 = vadd.xlane.f32.xlu0 %v1016
        %v1018 = vpop.xlane.xlu0 %1017
        %v1019 = vrcp.pop 32.0
        %v1020 = vmul.f32 32.0, %v1019
        %v1021 = vsub.f32 1.0, %v1020
        %v1022 = vmul.f32 %v1019, %v1021
        %v1023 = vadd.f32 %v1019, %v1022
        %vm1024 = vweird.f32 %v1019
        %v1025 = vsel %vm1024, %v1019, %v1023
        %v1026 = vmul.f32 %v1018, %v1025
        %v1027 = vsub.f32 %v1015, %v1026
        %v1028 = vmul.f32 %v1027, %v1027
        %v1029 = vsel %vm452, %v1028, 0.0
        %1030 = vadd.xlane.f32.xlu0 %v1029
        %v1031 = vpop.xlane.xlu0 %1030
        %v1032 = vmul.f32 %v1031, %v1025
        %v1033 = vadd.f32 %v1032, 1e-06
        %v1034 = vrsqrt.pop %v1033
        %v1035 = vmul.f32 %v1034, %v1033
        %v1036 = vmul.f32 %v1035, %v1034
        %v1037 = vmul.f32 0.5, %v1036
        %v1038 = vsub.f32 1.5, %v1037
        %v1039 = vmul.f32 %v1034, %v1038
        %vm1040 = vweird.f32 %v1033
        %vm1041 = vweird.f32 %v1034
        %vm1042 = vmor %vm1040, %vm1041
        %v1043 = vsel %vm1042, %v1034, %v1039
        %v1044 = vmul.f32 %v1027, %v1043
        %v1045 = vld [vmem:[%s7] sm:$0x1]
        %v1047 = vperm.slane %v1045, 0
        %v1049 = vmul.f32 %v1044, %v1047
        %v1050 = vld [vmem:[%s8] sm:$0x1]
        %v1052 = vperm.slane %v1050, 0
        %v1054 = vadd.f32 %v1049, %v1052
        %1055 = vst.msk [vmem:[%s397] sm:$0xff] %vm452, %v1054
        %s1056 = sand.u32 %s241, 1
        %s1057 = scalar_lea.sflag [#allocation4], %s1056
        %s1058 = sand.u32 %s241, 1
        %s1059 = smul.addr %s1058, 8
        %s1060 = scalar_lea.vmem [#allocation5], %s1059
        %s1061 = sand.u32 %s267, 1
        %s1062 = scalar_lea.sflag [#allocation7], %s1061
        %s1063 = sand.u32 %s267, 1
        %s1064 = smul.addr %s1063, 32
        %s1065 = scalar_lea.vmem [#allocation6], %s1064
        // Predicated region
        $region61: #{tpu_custom_call.1} parent=55 // pred_check
          %p1066 = pneg %p251
        $region62: #{tpu_custom_call.1} parent=55 // pred_check_branch
          %1068 = sbr.rel (%p1066) target = $region64
        $region63: #{tpu_custom_call.1} parent=55 // pred_region
          %1070 = vsyncadd %s1057, 0
          %s1071 = smul.addr %s29, 8
          %s1072 = scalar_lea.hbm %s9, %s1071
          %s1074 = sshll.u32 %s1060, 4
          %s1075 = int_to_ptr.vmem [resolvable:$true] %s1074
          %s1076 = sshll.u32 %s1072, 4
          %s1077 = int_to_ptr.hbm [resolvable:$true] %s1076
          %1079 = dma.vmem_to_hbm [thread:$0]  %s1075, 128, %s1077, %s1057
        $region64: #{tpu_custom_call.1} parent=55 // pred_fallthru
          _
        // Predicated region
        $region65: #{tpu_custom_call.1} parent=55 // pred_check
          %p1080 = pneg %p277
        $region66: #{tpu_custom_call.1} parent=55 // pred_check_branch
          %1082 = sbr.rel (%p1080) target = $region68
        $region67: #{tpu_custom_call.1} parent=55 // pred_region
          %1084 = vsyncadd %s1062, 0
          %s1085 = smul.addr %s29, 4
          %s1086 = smul.addr %s1085, 8
          %s1087 = scalar_lea.hbm %s10, %s1086
          %s1088 = sshll.u32 %s1065, 4
          %s1089 = int_to_ptr.vmem [resolvable:$true] %s1088
          %s1090 = sshll.u32 %s1087, 4
          %s1091 = int_to_ptr.hbm [resolvable:$true] %s1090
          %1096 = dma.vmem_to_hbm [thread:$0]  %s1089, 512, %s1091, %s1062, 128, 128, 8
        $region68: #{tpu_custom_call.1} parent=55 // pred_fallthru
          _
      $region56: #{tpu_custom_call.1} parent=5 // pred_fallthru
        _
      %p1097 = scmp.le.s32.totalorder 2, %s24
      // Predicated region
      $region69: #{tpu_custom_call.1} parent=5 // pred_check
        %p1098 = pneg %p1097
      $region70: #{tpu_custom_call.1} parent=5 // pred_check_branch
        %1100 = sbr.rel (%p1098) target = $region72
      $region71: #{tpu_custom_call.1} parent=5 // pred_region
        %s1101 = ssub.s32 %s24, 2
        // Predicated region
        $region73: #{tpu_custom_call.1} parent=71 // pred_check
          %p1102 = pneg %p257
        $region74: #{tpu_custom_call.1} parent=71 // pred_check_branch
          %1104 = sbr.rel (%p1102) target = $region76
        $region75: #{tpu_custom_call.1} parent=71 // pred_region
          %s1105 = sand.u32 %s242, 1
          %s1106 = scalar_lea.sflag [#allocation4], %s1105
          %s1107 = sand.u32 %s242, 1
          %s1108 = smul.addr %s1107, 8
          %s1109 = scalar_lea.vmem [#allocation5], %s1108
          %1111 = dma.done %s1106, 128
        $region76: #{tpu_custom_call.1} parent=71 // pred_fallthru
          _
        // Predicated region
        $region77: #{tpu_custom_call.1} parent=71 // pred_check
          %p1112 = pneg %p283
        $region78: #{tpu_custom_call.1} parent=71 // pred_check_branch
          %1114 = sbr.rel (%p1112) target = $region80
        $region79: #{tpu_custom_call.1} parent=71 // pred_region
          %s1115 = sand.u32 %s268, 1
          %s1116 = scalar_lea.sflag [#allocation7], %s1115
          %s1117 = sand.u32 %s268, 1
          %s1118 = smul.addr %s1117, 32
          %s1119 = scalar_lea.vmem [#allocation6], %s1118
          %1121 = dma.done %s1116, 512
        $region80: #{tpu_custom_call.1} parent=71 // pred_fallthru
          _
      $region72: #{tpu_custom_call.1} parent=5 // pred_fallthru
        _
    $region6: #{tpu_custom_call.1} parent=1 // loop_footer
      %s28 = sadd.s32 1, %s24
    $region7: #{tpu_custom_call.1} parent=1 // loop_footer_branch
      %23 = sbr.rel target = $region3
    $region8: #{tpu_custom_call.1} parent=1 // loop_exit
      _
    %1122 = vsyncpa [#allocation3], 1
    %s1123 = scalar_lea.sflag [#allocation3], 1
    %1124 = vsyncpa %s1123, 1
    %1125 = vsyncpa [#allocation4], 1
    %s1126 = scalar_lea.sflag [#allocation4], 1
    %1127 = vsyncpa %s1126, 1
    %1128 = vsyncpa [#allocation7], 1
    %s1129 = scalar_lea.sflag [#allocation7], 1
    %1130 = vsyncpa %s1129, 1

</llo_original>
